<compile_context>
chip_gen: v5e
topology: v5e:2x2
jax: 0.10.0
libtpu: 0.0.40
codegen_flags: <defaults>
</compile_context>

<pallas_src>
import functools

import jax
import jax.numpy as jnp
from jax.experimental import pallas as pl
from jax.experimental.pallas import tpu as pltpu


_M_INIT = -1e30  # finite "-inf" init for the running max (NaN-safe with -inf masks)


def _round_up(x, m):
    return (x + m - 1) // m * m


def _choose_tile(dim, target, align):
    """Pick (tile, padded_dim) for one dimension.

    Prefers the largest `align`-multiple divisor of `dim` that is <= target;
    a single full-dim block if dim <= target; otherwise pads `dim` up to a
    multiple of `target` (never silently takes a huge full-dim block).
    """
    if dim <= target:
        return dim, dim
    t = (target // align) * align
    while t >= max(align, target // 4):
        if dim % t == 0:
            return t, dim
        t -= align
    return target, _round_up(dim, target)


def _pad_to(x, shape):
    pads = [(0, t - s) for s, t in zip(x.shape, shape)]
    if any(p[1] for p in pads):
        x = jnp.pad(x, pads)
    return x


def _vmem_limit(estimate_bytes):
    # Raise v5e's 16 MiB scoped default, but never request more than 48 MiB so
    # v7x (64 MiB physical / 32 MiB default scoped) keeps headroom for Mosaic's
    # internal scratch and double buffering.
    return int(min(max(int(estimate_bytes * 1.5), 32 * 1024 * 1024),
                   48 * 1024 * 1024))


# ---------------------------------------------------------------------------
# Kernel 1: tiled linear layer  y = x @ W + b
# ---------------------------------------------------------------------------
def _linear_kernel_single(x_ref, w_ref, b_ref, o_ref):
    # Whole K in one step: no reduction grid axis, no accumulator scratch.
    o_ref[...] = (jnp.dot(x_ref[...], w_ref[...],
                          preferred_element_type=jnp.float32)
                  + b_ref[...].astype(jnp.float32)).astype(o_ref.dtype)


def _linear_kernel_acc(x_ref, w_ref, b_ref, o_ref, acc_ref):
    @pl.when(pl.program_id(2) == 0)
    def _init():
        acc_ref[...] = jnp.zeros(acc_ref.shape, acc_ref.dtype)

    acc_ref[...] += jnp.dot(x_ref[...], w_ref[...],
                            preferred_element_type=jnp.float32)

    @pl.when(pl.program_id(2) == pl.num_programs(2) - 1)
    def _store():
        o_ref[...] = (acc_ref[...] + b_ref[...].astype(jnp.float32)).astype(o_ref.dtype)


def linear(x, w, b):
    # x: (M, K), w: (K, N), b: (1, N).  Matmuls stay in the input dtype with
    # f32 accumulation; odd shapes are zero-padded (exact for matmul + bias).
    M, K = x.shape
    N = w.shape[1]
    sub = 16 if x.dtype.itemsize == 2 else 8
    tm, M_pad = _choose_tile(M, 512, sub)
    tn, N_pad = _choose_tile(N, 512, 128)
    if K <= 2048:
        tk, K_pad = K, K
    else:
        tk, K_pad = _choose_tile(K, 1024, 128)

    x = _pad_to(x, (M_pad, K_pad))
    w = _pad_to(w, (K_pad, N_pad))
    b = _pad_to(b, (1, N_pad))

    single = K_pad == tk
    itemsize = x.dtype.itemsize
    blocks = (tm * tk + tk * tn + tm * tn + tn) * itemsize
    scratch = 0 if single else tm * tn * 4
    vmem = _vmem_limit(2 * blocks + scratch)

    if single:
        out = pl.pallas_call(
            _linear_kernel_single,
            out_shape=jax.ShapeDtypeStruct((M_pad, N_pad), x.dtype),
            grid=(M_pad // tm, N_pad // tn),
            in_specs=[pl.BlockSpec((tm, tk), lambda i, j: (i, 0)),
                      pl.BlockSpec((tk, tn), lambda i, j: (0, j)),
                      pl.BlockSpec((1, tn), lambda i, j: (0, j))],
            out_specs=pl.BlockSpec((tm, tn), lambda i, j: (i, j)),
            compiler_params=pltpu.CompilerParams(
                dimension_semantics=("parallel", "parallel"),
                vmem_limit_bytes=vmem),
        )(x, w, b)
    else:
        out = pl.pallas_call(
            _linear_kernel_acc,
            out_shape=jax.ShapeDtypeStruct((M_pad, N_pad), x.dtype),
            grid=(M_pad // tm, N_pad // tn, K_pad // tk),
            in_specs=[pl.BlockSpec((tm, tk), lambda i, j, kk: (i, kk)),
                      pl.BlockSpec((tk, tn), lambda i, j, kk: (kk, j)),
                      pl.BlockSpec((1, tn), lambda i, j, kk: (0, j))],
            out_specs=pl.BlockSpec((tm, tn), lambda i, j, kk: (i, j)),
            scratch_shapes=[pltpu.VMEM((tm, tn), jnp.float32)],
            compiler_params=pltpu.CompilerParams(
                dimension_semantics=("parallel", "parallel", "arbitrary"),
                vmem_limit_bytes=vmem),
        )(x, w, b)

    if (M_pad, N_pad) != (M, N):
        out = out[:M, :N]
    return out


# ---------------------------------------------------------------------------
# Kernel 2: flash attention, all heads per (batch, q-tile) grid step
#   grid = (B, Sq//tq, Sk//tk); kv axis is the online-softmax reduction axis.
#   q/k/v blocks are (tq, H, d) / (tk, H, d) taken straight from the
#   (B, S, H, d) projection layout; the output block is lane-dense (tq, H*d).
# ---------------------------------------------------------------------------
def _flash_attn_kernel(*refs, scale, has_bias, heads_bias, kv_len, block_k,
                       mask_tail):
    if has_bias:
        q_ref, k_ref, v_ref, bias_ref, o_ref, m_sc, l_sc, acc_sc = refs
    else:
        q_ref, k_ref, v_ref, o_ref, m_sc, l_sc, acc_sc = refs
        bias_ref = None

    tq, H, d = q_ref.shape
    kv_i = pl.program_id(2)

    @pl.when(kv_i == 0)
    def _init():
        m_sc[...] = jnp.full(m_sc.shape, _M_INIT, m_sc.dtype)
        l_sc[...] = jnp.zeros(l_sc.shape, l_sc.dtype)
        acc_sc[...] = jnp.zeros(acc_sc.shape, acc_sc.dtype)

    if mask_tail:
        col = jax.lax.broadcasted_iota(jnp.int32, (tq, block_k), 1)
        valid = (col + kv_i * block_k) < kv_len          # padded keys -> False

    if has_bias and heads_bias == 1:
        bias_shared = bias_ref[0].astype(jnp.float32)    # loaded once per step

    # Static unroll over heads: every MXU op is a plain 2-D matmul (no
    # middle-batch relayouts) and only one head's (tq, tk) scores are live.
    for h in range(H):
        q_h = q_ref[:, h, :] * scale                     # scale on q, not on s
        k_h = k_ref[:, h, :]
        v_h = v_ref[:, h, :]

        # s[q, k] = sum_d q[q, d] * k[k, d]   (transposed-RHS MXU contraction)
        s = jax.lax.dot_general(
            q_h, k_h, dimension_numbers=(((1,), (1,)), ((), ())),
            preferred_element_type=jnp.float32)          # (tq, tk) f32

        if has_bias:
            s = s + (bias_shared if heads_bias == 1
                     else bias_ref[h].astype(jnp.float32))
        if mask_tail:
            s = jnp.where(valid, s, -jnp.inf)

        m_prev = m_sc[:, h:h + 1]                                        # (tq, 1)
        m_next = jnp.maximum(m_prev, jnp.max(s, axis=-1, keepdims=True))
        alpha = jnp.exp(m_prev - m_next)
        p = jnp.exp(s - m_next)                                          # (tq, tk)
        l_sc[:, h:h + 1] = alpha * l_sc[:, h:h + 1] + jnp.sum(p, axis=-1,
                                                              keepdims=True)

        # pv[q, d] = sum_k p[q, k] * v[k, d]
        pv = jax.lax.dot_general(
            p.astype(v_h.dtype), v_h,
            dimension_numbers=(((1,), (0,)), ((), ())),
            preferred_element_type=jnp.float32)                          # (tq, d)
        acc_sc[:, h * d:(h + 1) * d] = (alpha * acc_sc[:, h * d:(h + 1) * d] + pv)
        m_sc[:, h:h + 1] = m_next

    # TODO(synk): attention dropout is identity here (eval mode).
    @pl.when(kv_i == pl.num_programs(2) - 1)
    def _finalize():
        for h in range(H):
            # Exact reciprocal keeps the 1e-4 parity check below; flipping
            # approx=True moves the divide onto the idle EUP slot if the
            # precision budget allows.
            inv = pl.reciprocal(l_sc[:, h:h + 1], approx=False)
            acc_sc[:, h * d:(h + 1) * d] *= inv
        # Single lane-dense (tq, H*d) store; no per-head masked stores and no
        # large transient value (streams straight out of the f32 accumulator).
        o_ref[...] = acc_sc[...].astype(o_ref.dtype)


def _flash_attention(q, k, v, bias, scale):
    # q: (B, Sq, H, d); k, v: (B, Sk, H, d); bias: None or (Bb, Hb, Sq, Sk)
    B, Sq, H, d = q.shape
    Sk = k.shape[1]
    itemsize = q.dtype.itemsize
    has_bias = bias is not None
    Bb, Hb = (bias.shape[0], bias.shape[1]) if has_bias else (1, 1)
    b_item = bias.dtype.itemsize if has_bias else 0

    tq, Sq_pad = _choose_tile(Sq, 256, 8)
    tk, Sk_pad = _choose_tile(Sk, 256, 128)

    def vmem_est(tq_, tk_):
        dp = _round_up(d, 128)
        hp = _round_up(H, 8)
        hd = _round_up(H * d, 128)
        blocks = (tq_ * hp * dp + 2 * tk_ * hp * dp + tq_ * hd) * itemsize
        if has_bias:
            blocks += Hb * _round_up(tq_, 8) * _round_up(tk_, 128) * b_item
        scratch = tq_ * hd * 4 + 2 * tq_ * 128 * 4
        return 2 * blocks + scratch          # blocks are double-buffered

    # Size tiles from the VMEM budget (matters on v7x's 64 MiB VMEM).
    budget = 40 * 1024 * 1024
    while vmem_est(tq, tk) > budget and tk > 128:
        tk = max(128, _round_up(tk // 2, 128))
        Sk_pad = _round_up(Sk, tk)
    while vmem_est(tq, tk) > budget and tq > 64:
        tq = max(64, _round_up(tq // 2, 8))
        Sq_pad = _round_up(Sq, tq)

    mask_tail = Sk_pad != Sk

    q = _pad_to(q, (B, Sq_pad, H, d))
    k = _pad_to(k, (B, Sk_pad, H, d))
    v = _pad_to(v, (B, Sk_pad, H, d))
    if has_bias:
        bias = _pad_to(bias, (Bb, Hb, Sq_pad, Sk_pad))

    grid = (B, Sq_pad // tq, Sk_pad // tk)
    q_spec = pl.BlockSpec((None, tq, H, d), lambda b, qi, ki: (b, qi, 0, 0))
    kv_spec = pl.BlockSpec((None, tk, H, d), lambda b, qi, ki: (b, ki, 0, 0))
    out_spec = pl.BlockSpec((None, tq, H * d), lambda b, qi, ki: (b, qi, 0))

    in_specs = [q_spec, kv_spec, kv_spec]
    args = [q, k, v]
    if has_bias:
        in_specs.append(pl.BlockSpec(
            (None, Hb, tq, tk),
            lambda b, qi, ki: ((b if Bb > 1 else 0), 0, qi, ki)))
        args.append(bias)

    kernel = functools.partial(
        _flash_attn_kernel, scale=scale, has_bias=has_bias, heads_bias=Hb,
        kv_len=Sk, block_k=tk, mask_tail=mask_tail)

    out = pl.pallas_call(
        kernel,
        out_shape=jax.ShapeDtypeStruct((B, Sq_pad, H * d), q.dtype),
        grid=grid,
        in_specs=in_specs,
        out_specs=out_spec,
        scratch_shapes=[
            pltpu.VMEM((tq, H), jnp.float32),        # running max per head
            pltpu.VMEM((tq, H), jnp.float32),        # running sum per head
            pltpu.VMEM((tq, H * d), jnp.float32),    # lane-dense output acc
        ],
        compiler_params=pltpu.CompilerParams(
            # NOTE: on v7x keep B*(Sq_pad//tq) >= 2 so both TensorCores are fed.
            dimension_semantics=("parallel", "parallel", "arbitrary"),
            vmem_limit_bytes=_vmem_limit(vmem_est(tq, tk)),
        ),
    )(*args)

    if Sq_pad != Sq:
        out = out[:, :Sq, :]
    return out                                        # (B, Sq, H*d)


# ---------------------------------------------------------------------------
# Module wrapper (forward pass of MultiHeadAttention)
# ---------------------------------------------------------------------------
def multi_head_attention(params, q, k, v, attn_bias=None):
    num_heads = params["num_heads"]
    hidden = q.shape[-1]
    d = hidden // num_heads
    scale = d ** (-0.5)

    B, Sq, _ = q.shape
    Sk = k.shape[1]

    # --- projections (fused weights are pre-concatenated in init_params) ----
    if q is k and k is v:
        w_qkv, b_qkv = params.get("wqkv"), params.get("bqkv")
        if w_qkv is None:
            w_qkv = jnp.concatenate([params["wq"], params["wk"], params["wv"]], 1)
            b_qkv = jnp.concatenate([params["bq"], params["bk"], params["bv"]], 1)
        qkv = linear(q.reshape(B * Sq, hidden), w_qkv, b_qkv)
        qp = qkv[:, :hidden]
        kp = qkv[:, hidden:2 * hidden]
        vp = qkv[:, 2 * hidden:]
    else:
        qp = linear(q.reshape(B * Sq, hidden), params["wq"], params["bq"])
        if k is v:
            w_kv, b_kv = params.get("wkv"), params.get("bkv")
            if w_kv is None:
                w_kv = jnp.concatenate([params["wk"], params["wv"]], 1)
                b_kv = jnp.concatenate([params["bk"], params["bv"]], 1)
            kvp = linear(k.reshape(B * Sk, hidden), w_kv, b_kv)
            kp, vp = kvp[:, :hidden], kvp[:, hidden:]
        else:
            kp = linear(k.reshape(B * Sk, hidden), params["wk"], params["bk"])
            vp = linear(v.reshape(B * Sk, hidden), params["wv"], params["bv"])

    # Free reshapes only (no HBM transposes): (B*S, H*d) -> (B, S, H, d).
    qh = qp.reshape(B, Sq, num_heads, d)
    kh = kp.reshape(B, Sk, num_heads, d)
    vh = vp.reshape(B, Sk, num_heads, d)

    bias = None
    if attn_bias is not None:
        bias = jnp.asarray(attn_bias)                # keep native dtype (no f32 upcast)
        bias = bias.reshape((1,) * (4 - bias.ndim) + bias.shape)
        if (bias.shape[0] not in (1, B) or bias.shape[1] not in (1, num_heads)
                or bias.shape[2:] != (Sq, Sk)):
            raise ValueError(
                f"attn_bias shape {attn_bias.shape} is not broadcastable to "
                f"({B}, {num_heads}, {Sq}, {Sk})")

    # TODO(synk): the original module's np.save('attention.npy') debug hook
    # (file I/O on a specific shape) has no Pallas equivalent and is omitted.
    oh = _flash_attention(qh, kh, vh, bias, scale)   # (B, Sq, H*d), lane-dense

    out = linear(oh.reshape(B * Sq, hidden), params["wo"], params["bo"])
    return out.reshape(B, Sq, hidden)


def init_params(key, hidden_size, num_heads, dtype=jnp.float32):
    att = hidden_size // num_heads
    ks = jax.random.split(key, 8)
    bound = 1.0 / (hidden_size ** 0.5)

    def u(kk, shape):
        return jax.random.uniform(kk, shape, dtype=dtype, minval=-bound, maxval=bound)

    p = {
        "num_heads": num_heads,
        # weights stored as (in_features, out_features); biases as (1, out)
        "wq": u(ks[0], (hidden_size, num_heads * att)),
        "bq": u(ks[1], (1, num_heads * att)),
        "wk": u(ks[2], (hidden_size, num_heads * att)),
        "bk": u(ks[3], (1, num_heads * att)),
        "wv": u(ks[4], (hidden_size, num_heads * att)),
        "bv": u(ks[5], (1, num_heads * att)),
        "wo": u(ks[6], (num_heads * att, hidden_size)),
        "bo": u(ks[7], (1, hidden_size)),
    }
    # Pre-fused projection weights, built once here (not per forward call).
    p["wqkv"] = jnp.concatenate([p["wq"], p["wk"], p["wv"]], axis=1)
    p["bqkv"] = jnp.concatenate([p["bq"], p["bk"], p["bv"]], axis=1)
    p["wkv"] = jnp.concatenate([p["wk"], p["wv"]], axis=1)
    p["bkv"] = jnp.concatenate([p["bk"], p["bv"]], axis=1)
    return p


def _reference(params, q, k, v, attn_bias=None):
    """Pure-JAX reference of the PyTorch forward for a numerical sanity check."""
    H = params["num_heads"]
    B, Sq, hid = q.shape
    Sk = k.shape[1]
    d = hid // H
    scale = d ** (-0.5)
    qp = q @ params["wq"] + params["bq"]
    kp = k @ params["wk"] + params["bk"]
    vp = v @ params["wv"] + params["bv"]
    qh = qp.reshape(B, Sq, H, d).transpose(0, 2, 1, 3) * scale
    kh = kp.reshape(B, Sk, H, d).transpose(0, 2, 1, 3)
    vh = vp.reshape(B, Sk, H, d).transpose(0, 2, 1, 3)
    s = jnp.einsum("bhqd,bhkd->bhqk", qh, kh)
    if attn_bias is not None:
        s = s + jnp.asarray(attn_bias, s.dtype)
    p = jax.nn.softmax(s, axis=-1)
    o = jnp.einsum("bhqk,bhkd->bhqd", p, vh)
    o = o.transpose(0, 2, 1, 3).reshape(B, Sq, H * d)
    return o @ params["wo"] + params["bo"]


if __name__ == "__main__":
    hidden_size = 32
    num_heads = 4
    batch = 2
    seq = 8
    attention_dropout_rate = 0.1  # inert in eval mode

    key = jax.random.PRNGKey(0)
    kp, kq, kk, kv, kb = jax.random.split(key, 5)
    params = init_params(kp, hidden_size, num_heads)

    q = jax.random.normal(kq, (batch, seq, hidden_size), dtype=jnp.float32)
    k = jax.random.normal(kk, (batch, seq, hidden_size), dtype=jnp.float32)
    v = jax.random.normal(kv, (batch, seq, hidden_size), dtype=jnp.float32)
    bias = jax.random.normal(kb, (batch, 1, seq, seq), dtype=jnp.float32)

    # 1) shared K/V input, no bias (fused KV projection + no-bias kernel)
    out1 = jax.block_until_ready(multi_head_attention(params, q, k, k))
    ref1 = _reference(params, q, k, k)
    # 2) self-attention, no bias (fused QKV projection)
    out2 = jax.block_until_ready(multi_head_attention(params, q, q, q))
    ref2 = _reference(params, q, q, q)
    # 3) distinct q/k/v with a broadcastable attention bias (bias kernel)
    out3 = jax.block_until_ready(multi_head_attention(params, q, k, v, attn_bias=bias))
    ref3 = _reference(params, q, k, v, attn_bias=bias)

    for out, ref in ((out1, ref1), (out2, ref2), (out3, ref3)):
        assert out.shape == (batch, seq, hidden_size)
        assert jnp.allclose(out, ref, atol=1e-4, rtol=1e-4)

    print("KERNEL_OK")
</pallas_src>

<mosaic_0001>
module attributes {stable_mosaic.version = 11 : i64} {
  func.func @_linear_kernel_single(%arg0: i32, %arg1: i32, %arg2: memref<16x32xf32, #tpu.memory_space<vmem>>, %arg3: memref<32x32xf32, #tpu.memory_space<vmem>>, %arg4: memref<1x32xf32, #tpu.memory_space<vmem>>, %arg5: memref<16x32xf32, #tpu.memory_space<vmem>>) attributes {dimension_semantics = [#tpu.dimension_semantics<parallel>, #tpu.dimension_semantics<parallel>], iteration_bounds = array<i64: 1, 1>, scalar_prefetch = 0 : i64, scratch_operands = 0 : i64, tpu.core_type = #tpu.core_type<tc>, window_params = [{transform_indices = @transform_0, window_bounds = array<i64: 16, 32>}, {transform_indices = @transform_1, window_bounds = array<i64: 32, 32>}, {transform_indices = @transform_2, window_bounds = array<i64: 1, 32>}, {transform_indices = @transform_3, window_bounds = array<i64: 16, 32>}]} {
    %c0 = arith.constant 0 : index
    %c0_0 = arith.constant 0 : index
    %0 = vector.load %arg2[%c0, %c0_0] : memref<16x32xf32, #tpu.memory_space<vmem>>, vector<16x32xf32>
    %c0_1 = arith.constant 0 : index
    %c0_2 = arith.constant 0 : index
    %1 = vector.load %arg3[%c0_1, %c0_2] : memref<32x32xf32, #tpu.memory_space<vmem>>, vector<32x32xf32>
    %cst = arith.constant dense<0.000000e+00> : vector<16x32xf32>
    %2 = tpu.matmul %0, %1, %cst {dimension_numbers = #tpu.dot_dimension_numbers<[1], [0], [0], [1], [0, 0, 1, 1], [], []>} : vector<16x32xf32>, vector<32x32xf32>, vector<16x32xf32> -> vector<16x32xf32>
    %c0_3 = arith.constant 0 : index
    %c0_4 = arith.constant 0 : index
    %3 = vector.load %arg4[%c0_3, %c0_4] : memref<1x32xf32, #tpu.memory_space<vmem>>, vector<1x32xf32>
    %4 = vector.broadcast %3 : vector<1x32xf32> to vector<16x32xf32>
    %5 = arith.addf %2, %4 : vector<16x32xf32>
    %c0_5 = arith.constant 0 : index
    %c0_6 = arith.constant 0 : index
    %6 = vector.load %arg5[%c0_5, %c0_6] : memref<16x32xf32, #tpu.memory_space<vmem>>, vector<16x32xf32>
    tpu.vector_store %arg5[%c0_5, %c0_6], %5 {strides = array<i32>} : memref<16x32xf32, #tpu.memory_space<vmem>>, vector<16x32xf32>,
    return
  }
  func.func @transform_0(%arg0: i32, %arg1: i32) -> (i32, i32) {
    %c0_i32 = arith.constant 0 : i32
    %c0_i32_0 = arith.constant 0 : i32
    return %arg0, %c0_i32 : i32, i32
  }
  func.func @transform_1(%arg0: i32, %arg1: i32) -> (i32, i32) {
    %c0_i32 = arith.constant 0 : i32
    %c0_i32_0 = arith.constant 0 : i32
    return %c0_i32, %arg1 : i32, i32
  }
  func.func @transform_2(%arg0: i32, %arg1: i32) -> (i32, i32) {
    %c0_i32 = arith.constant 0 : i32
    %c0_i32_0 = arith.constant 0 : i32
    return %c0_i32, %arg1 : i32, i32
  }
  func.func @transform_3(%arg0: i32, %arg1: i32) -> (i32, i32) {
    %c0_i32 = arith.constant 0 : i32
    return %arg0, %arg1 : i32, i32
  }
}

</mosaic_0001>

<llo_original>
// kernel: tpu_custom_call.1
$region0: #{tpu_custom_call.1}
  #allocation0 [shape = 'u32[]', space=smem, size = 0x4, offset = 0x4, fixed_abs, tag = 'smem constant byte address 0x4 - core index']
  #allocation1 [shape = 'u32[72,128]{1,0:T(1,128)}', space=vmem, size = 0x9000, scoped, tag = 'internal scratch']
  %s0 = inlined_call_operand.hbm [shape: f32[16,32], index: 0, kind: input, shape index: {}]
  %s1 = inlined_call_operand.hbm [shape: f32[32,32], index: 1, kind: input, shape index: {}]
  %s2 = inlined_call_operand.vmem [shape: f32[1,32], index: 2, kind: input, shape index: {}]
  %s3 = inlined_call_operand.hbm [shape: f32[16,32], index: 3, kind: output, shape index: {}]
  %s4 = sld [smem:[#allocation0]]
  $region30: #{tpu_custom_call.1} parent=0
    _
  %s6 = ssub.s32 1, %s4
  %s7 = scalar_select 0, %s6, %s4
  $region1: #{tpu_custom_call.1} parent=0
    #allocation2 [shape = 'u8[8192]{0}', space=vmem, size = 0x2000, scoped, tag = 'input window, operand 0, single buffered']
    #allocation3 [shape = 's32[1]{0}', space=sflag, size = 0x4, scoped, tag = 'scoped memory for tpu_custom_call.1']
    #allocation4 [shape = 's32[1]{0}', space=sflag, size = 0x4, scoped, tag = 'scoped memory for tpu_custom_call.1']
    #allocation5 [shape = 'u8[16384]{0}', space=vmem, size = 0x4000, scoped, tag = 'input window, operand 1, single buffered']
    #allocation6 [shape = 's32[1]{0}', space=sflag, size = 0x4, scoped, tag = 'scoped memory for tpu_custom_call.1']
    #allocation7 [shape = 'u8[8192]{0}', space=vmem, size = 0x2000, scoped, tag = 'output window, operand 0, single buffered']
    %8 = vsyncpa [#allocation3], 0
    %9 = vsyncpa [#allocation6], 0
    %10 = vsyncpa [#allocation4], 0
    // Predicated region
    $region2: #{tpu_custom_call.1} parent=1 // pred_check
      _
    $region3: #{tpu_custom_call.1} parent=1 // pred_check_branch
      %12 = sbr.rel (0) target = $region5
    $region4: #{tpu_custom_call.1} parent=1 // pred_region
      %14 = vsyncadd [#allocation3], 0
      %s15 = sshll.u32 %s0, 4
      %s16 = int_to_ptr.hbm [resolvable:$true] %s15
      %s17 = sshll.u32 [#allocation2], 4
      %s18 = int_to_ptr.vmem [resolvable:$true] %s17
      %23 = dma.hbm_to_vmem [thread:$0]  %s16, 256, %s18, [#allocation3], 128, 128, 8
    $region5: #{tpu_custom_call.1} parent=1 // pred_fallthru
      _
    // Predicated region
    $region6: #{tpu_custom_call.1} parent=1 // pred_check
      _
    $region7: #{tpu_custom_call.1} parent=1 // pred_check_branch
      %25 = sbr.rel (0) target = $region9
    $region8: #{tpu_custom_call.1} parent=1 // pred_region
      %27 = vsyncadd [#allocation6], 0
      %s28 = sshll.u32 %s1, 4
      %s29 = int_to_ptr.hbm [resolvable:$true] %s28
      %s30 = sshll.u32 [#allocation5], 4
      %s31 = int_to_ptr.vmem [resolvable:$true] %s30
      %36 = dma.hbm_to_vmem [thread:$0]  %s29, 512, %s31, [#allocation6], 128, 128, 8
    $region9: #{tpu_custom_call.1} parent=1 // pred_fallthru
      _
    // Predicated region
    $region10: #{tpu_custom_call.1} parent=1 // pred_check
      _
    $region11: #{tpu_custom_call.1} parent=1 // pred_check_branch
      %38 = sbr.rel (0) target = $region13
    $region12: #{tpu_custom_call.1} parent=1 // pred_region
      _
    $region13: #{tpu_custom_call.1} parent=1 // pred_fallthru
      _
    // Predicated region
    $region14: #{tpu_custom_call.1} parent=1 // pred_check
      _
    $region15: #{tpu_custom_call.1} parent=1 // pred_check_branch
      %40 = sbr.rel (0) target = $region17
    $region16: #{tpu_custom_call.1} parent=1 // pred_region
      %42 = dma.done [#allocation3], 256
    $region17: #{tpu_custom_call.1} parent=1 // pred_fallthru
      _
    // Predicated region
    $region18: #{tpu_custom_call.1} parent=1 // pred_check
      _
    $region19: #{tpu_custom_call.1} parent=1 // pred_check_branch
      %44 = sbr.rel (0) target = $region21
    $region20: #{tpu_custom_call.1} parent=1 // pred_region
      %46 = dma.done [#allocation6], 512
    $region21: #{tpu_custom_call.1} parent=1 // pred_fallthru
      _
    %v47 = vld [vmem:[#allocation2] sm:$0xff]
    %v48 = vld [vmem:[#allocation2 + $0x8] sm:$0xff]
    %v49 = vld [vmem:[#allocation5] sm:$0xff]
    %v50 = vld [vmem:[#allocation5 + $0x8] sm:$0xff]
    %v51 = vld [vmem:[#allocation5 + $0x10] sm:$0xff]
    %v52 = vld [vmem:[#allocation5 + $0x18] sm:$0xff]
    %v53 = vld [vmem:[%s2] sm:$0x1]
    %v55 = vperm.slane %v53, 0
    %vm57 = vcmask 261120
    %v59 = vsel %vm57, %v47, 0
    %v62 = vsel %vm57, %v48, 0
    %64 = vmatpush.msra.mxu0 0.0
    %65 = vmatpush.msra.mxu0 0.0
    %66 = vmatpush.msra.mxu0 0.0
    %67 = vmatpush.msra.mxu0 0.0
    %68 = vmatpush.msra.mxu0 0.0
    %69 = vmatpush.msra.mxu0 0.0
    %70 = vmatpush.msra.mxu0 0.0
    %71 = vmatpush.msra.mxu0 0.0
    %72 = vmatpush.msra.mxu0 0.0
    %73 = vmatpush.msra.mxu0 0.0
    %74 = vmatpush.msra.mxu0 0.0
    %75 = vmatpush.msra.mxu0 0.0
    %76 = vmatpush.msra.mxu0 %v52
    %77 = vmatpush.msra.mxu0 %v51
    %78 = vmatpush.msra.mxu0 %v50
    %79 = vmatpush.msra.mxu0 %v49
    %80 = vmatmul.f32.gmra.mxu0 %v59
    %v81 = vpop.f32.mrf.mxu0
    %v82 = vadd.f32 %v55, %v81
    %83 = vmatmul.f32.gmra.mxu0 %v62
    %v84 = vpop.f32.mrf.mxu0
    %v85 = vadd.f32 %v55, %v84
    %86 = vdwg.mxu0
    %87 = vst.msk [vmem:[#allocation7] sm:$0xff] %vm57, %v82
    %88 = vst.msk [vmem:[#allocation7 + $0x8] sm:$0xff] %vm57, %v85
    // Predicated region
    $region22: #{tpu_custom_call.1} parent=1 // pred_check
      _
    $region23: #{tpu_custom_call.1} parent=1 // pred_check_branch
      %90 = sbr.rel (0) target = $region25
    $region24: #{tpu_custom_call.1} parent=1 // pred_region
      %92 = vsyncadd [#allocation4], 0
      %s93 = sshll.u32 [#allocation7], 4
      %s94 = int_to_ptr.vmem [resolvable:$true] %s93
      %s95 = sshll.u32 %s3, 4
      %s96 = int_to_ptr.hbm [resolvable:$true] %s95
      %101 = dma.vmem_to_hbm [thread:$0]  %s94, 256, %s96, [#allocation4], 128, 128, 8
    $region25: #{tpu_custom_call.1} parent=1 // pred_fallthru
      _
    // Predicated region
    $region26: #{tpu_custom_call.1} parent=1 // pred_check
      _
    $region27: #{tpu_custom_call.1} parent=1 // pred_check_branch
      %103 = sbr.rel (0) target = $region29
    $region28: #{tpu_custom_call.1} parent=1 // pred_region
      %105 = dma.done [#allocation4], 256
    $region29: #{tpu_custom_call.1} parent=1 // pred_fallthru
      _
    %106 = vsyncpa [#allocation3], 1
    %107 = vsyncpa [#allocation6], 1
    %108 = vsyncpa [#allocation4], 1

</llo_original>
